<compile_context>
chip_gen: v7x
topology: tpu7x:2x2x1
jax: 0.10.0
libtpu: 0.0.40
codegen_flags: <defaults>
</compile_context>

<pallas_src>
import functools

import jax
import jax.numpy as jnp
from jax import lax
from jax.experimental import pallas as pl
from jax.experimental.pallas import tpu as pltpu

EPS = 1e-5  # nn.InstanceNorm2d default eps


# ----------------------------------------------------------------------------
# helpers
# ----------------------------------------------------------------------------
def _round_up(x, m):
    return (x + m - 1) // m * m


def _choose_tn(cout):
    """Lane-dense output tile width; prefer >=2 tiles so v7x's 2nd core works."""
    if cout % 256 == 0 and cout >= 512:
        return 256
    if cout % 128 == 0:
        return 128
    # TODO(synk): pad sub-128 channel counts to 128 (and slice outside) so
    # v5e's single vst slot never sees masked partial stores; test-sized dims
    # (dp=4) fall through here.
    return cout


@functools.lru_cache(maxsize=1)
def _vmem_capacity_bytes():
    try:
        return int(pltpu.get_tpu_info().vmem_capacity_bytes)
    except Exception:
        return 64 << 20          # v7x per-TC floor


def _compiler_params(pipeline_bytes, resident_bytes=0):
    """Parallel grid axes + generation-aware scoped-VMEM limit with headroom."""
    need = int(2.3 * pipeline_bytes) + int(resident_bytes) + (2 << 20)
    ceiling = max(32 << 20, (_vmem_capacity_bytes() * 3) // 4)
    vmem = max(32 << 20, min(need, ceiling))
    return pltpu.CompilerParams(
        dimension_semantics=("parallel", "parallel"),
        vmem_limit_bytes=vmem)


def _instance_norm(y, inv_n, eps, mask=None):
    """Two-pass per-channel InstanceNorm over axis 0 of an (rows, C) f32 tile."""
    ym = y if mask is None else y * mask
    mean = jnp.sum(ym, axis=0, keepdims=True) * inv_n
    cen = y - mean
    cm = cen if mask is None else cen * mask
    var = jnp.sum(cm * cen, axis=0, keepdims=True) * inv_n
    return cen * lax.rsqrt(var + eps)


# ----------------------------------------------------------------------------
# Kernel 1: fused quad 1x1 conv + InstanceNorm (+ per-branch ReLU)
#   branch 0 = conv1 (no ReLU), branches 1..3 = conv6/12/18 first block (ReLU)
# ----------------------------------------------------------------------------
def _quad_pw_kernel(x_ref, w_ref, o_ref, *, inv_n, eps):
    y = jnp.dot(x_ref[...], w_ref[...], preferred_element_type=jnp.float32)
    y = _instance_norm(y, inv_n, eps)
    j = pl.program_id(1)

    @pl.when(j == 0)                       # conv1: activation='none'
    def _():
        o_ref[...] = y.astype(o_ref.dtype)

    @pl.when(j > 0)                        # branch-a convs: ReLU
    def _():
        o_ref[...] = jnp.maximum(y, 0.0).astype(o_ref.dtype)


def quad_pointwise_instnorm(x, w_stack, *, eps=EPS):
    """Four 1x1 convs + IN sharing one HBM read of x.

    x: (B, HW, C), w_stack: (4, C, dp).  Returns (4, B, HW, dp) in x.dtype.
    """
    B, HW, C = map(int, x.shape)
    dp = int(w_stack.shape[2])
    isz = x.dtype.itemsize
    kernel = functools.partial(_quad_pw_kernel, inv_n=1.0 / HW, eps=eps)

    flops = 2 * B * HW * C * 4 * dp
    bytes_accessed = isz * (B * HW * C + 4 * C * dp + 4 * B * HW * dp)
    pipeline_bytes = isz * (HW * C + C * dp + HW * dp)

    return pl.pallas_call(
        kernel,
        out_shape=jax.ShapeDtypeStruct((4, B, HW, dp), x.dtype),
        grid=(B, 4),
        in_specs=[
            pl.BlockSpec((None, HW, C), lambda b, j: (b, 0, 0)),   # x reused over j
            pl.BlockSpec((None, C, dp), lambda b, j: (j, 0, 0)),   # per-branch weight
        ],
        out_specs=pl.BlockSpec((None, None, HW, dp), lambda b, j: (j, b, 0, 0)),
        compiler_params=_compiler_params(pipeline_bytes),
        cost_estimate=pl.CostEstimate(
            flops=int(flops), transcendentals=int(4 * B * dp),
            bytes_accessed=int(bytes_accessed)),
    )(x, w_stack)


# ----------------------------------------------------------------------------
# Kernel 2: dilated 3x3 conv (stride 1, pad=d, dil=d) + InstanceNorm
#   9 statically shifted, sublane-aligned matmuls over the padded activation
# ----------------------------------------------------------------------------
def _dilated_in_kernel(xp_ref, w_ref, o_ref, xs1_ref, xs2_ref, *,
                       d, Wp, W, L, R, inv_n, eps):
    # Two column-shifted copies of the padded activation.  The (misaligned)
    # shift happens once per step; every tap slice below then starts at a
    # sublane-aligned offset (ty*d*Wp with Wp % 8 == 0), so the 9 matmul LHS
    # loads need no hidden per-tap realignment copies.
    xs1_ref[...] = xp_ref[d:d + R, :]
    xs2_ref[...] = xp_ref[2 * d:2 * d + R, :]

    srcs = (xp_ref, xs1_ref, xs2_ref)
    acc = None
    for ty in range(3):
        row_off = ty * d * Wp                           # multiple of 8
        for tx in range(3):
            tap = srcs[tx][row_off:row_off + L, :]
            part = jnp.dot(tap, w_ref[ty * 3 + tx],
                           preferred_element_type=jnp.float32)
            acc = part if acc is None else acc + part
    # TODO(synk): pair taps into K=2*Cin matmuls to fill the 256-deep MXU on
    # v6e/v7x (K=dp=128 half-fills the systolic depth there).

    # Valid-column mask built in-kernel from an iota.  Float-math modulo only
    # (mul/floor/sub/compare): exact for the row counts used here and avoids
    # vector integer div/rem.
    r = lax.broadcasted_iota(jnp.int32, (L, 1), 0).astype(jnp.float32)
    row = jnp.floor((r + 0.5) * (1.0 / Wp))
    col = r - row * Wp
    mask = (col < (W - 0.5)).astype(jnp.float32)

    y = _instance_norm(acc, inv_n, eps, mask=mask)
    o_ref[...] = y.astype(o_ref.dtype)


def dilated3x3_conv_instnorm(y_bhwc, w9, d, *, eps=EPS):
    """Dilated 3x3 conv + InstanceNorm.  y_bhwc: (B,H,W,Cin), w9: (9,Cin,Cout)."""
    B, H, W, cin = map(int, y_bhwc.shape)
    cout = int(w9.shape[2])
    isz = y_bhwc.dtype.itemsize

    Wp = _round_up(W + 2 * d, 8)   # sublane-aligned padded width
    Hp = H + 2 * d + 1             # extra zero row keeps every slice in range
    L = H * Wp                     # extended (valid rows x padded cols) grid
    R = L + 2 * d * Wp             # rows per shifted scratch copy
    P = Hp * Wp

    # Only the zero-pad halo + the column crop stay in XLA (cheap plumbing);
    # all MACs and the InstanceNorm run inside the kernel.
    xp = jnp.pad(y_bhwc, ((0, 0), (d, d + 1), (d, Wp - W - d), (0, 0)))
    xp = xp.reshape(B, P, cin)

    tn = _choose_tn(cout)
    kernel = functools.partial(_dilated_in_kernel, d=d, Wp=Wp, W=W, L=L, R=R,
                               inv_n=1.0 / (H * W), eps=eps)

    flops = 2 * B * L * 9 * cin * cout
    bytes_accessed = isz * (B * (P * cin + L * cout) + 9 * cin * cout)
    pipeline_bytes = isz * (P * cin + 9 * cin * tn + L * tn)
    resident_bytes = isz * 2 * R * cin

    y_ext = pl.pallas_call(
        kernel,
        out_shape=jax.ShapeDtypeStruct((B, L, cout), y_bhwc.dtype),
        grid=(B, cout // tn),
        in_specs=[
            pl.BlockSpec((None, P, cin), lambda b, j: (b, 0, 0)),
            pl.BlockSpec((9, cin, tn), lambda b, j: (0, 0, j)),
        ],
        out_specs=pl.BlockSpec((None, L, tn), lambda b, j: (b, 0, j)),
        scratch_shapes=[pltpu.VMEM((R, cin), y_bhwc.dtype),
                        pltpu.VMEM((R, cin), y_bhwc.dtype)],
        compiler_params=_compiler_params(pipeline_bytes, resident_bytes),
        cost_estimate=pl.CostEstimate(
            flops=int(flops), transcendentals=int(B * cout),
            bytes_accessed=int(bytes_accessed)),
    )(xp, w9)

    # TODO(synk): crop the padded columns inside the kernel (or hand the
    # extended layout to the fuse kernel) to avoid this HBM round trip.
    return y_ext.reshape(B, H, Wp, cout)[:, :, :W, :].reshape(B, H * W, cout)


# ----------------------------------------------------------------------------
# Kernel 3: fuse conv — channel concat folded into 4 accumulated matmuls + IN
# ----------------------------------------------------------------------------
def _fuse_kernel(c1_ref, c6_ref, c12_ref, c18_ref, w_ref, o_ref, *, inv_n, eps):
    acc = None
    for i, xr in enumerate((c1_ref, c6_ref, c12_ref, c18_ref)):
        part = jnp.dot(xr[...], w_ref[i], preferred_element_type=jnp.float32)
        acc = part if acc is None else acc + part
    y = _instance_norm(acc, inv_n, eps)
    o_ref[...] = y.astype(o_ref.dtype)


def fuse_conv_instnorm(quad, c6, c12, c18, w4, *, eps=EPS, out_dtype):
    """Concat + 1x1 fuse conv + IN.  quad: (4,B,HW,dp) (block 0 = conv1 output,
    read directly via BlockSpec); c6/c12/c18: (B,HW,dp); w4: (4,dp,Cout)."""
    _, B, HW, dp = map(int, quad.shape)
    cout = int(w4.shape[2])
    isz = quad.dtype.itemsize
    osz = jnp.dtype(out_dtype).itemsize
    tn = _choose_tn(cout)
    kernel = functools.partial(_fuse_kernel, inv_n=1.0 / HW, eps=eps)

    flops = 2 * B * HW * 4 * dp * cout
    bytes_accessed = isz * (4 * B * HW * dp + 4 * dp * cout) + osz * B * HW * cout
    pipeline_bytes = isz * (4 * HW * dp + 4 * dp * tn) + osz * HW * tn

    return pl.pallas_call(
        kernel,
        out_shape=jax.ShapeDtypeStruct((B, HW, cout), out_dtype),
        grid=(B, cout // tn),
        in_specs=[
            pl.BlockSpec((None, None, HW, dp), lambda b, j: (0, b, 0, 0)),  # conv1
            pl.BlockSpec((None, HW, dp), lambda b, j: (b, 0, 0)),
            pl.BlockSpec((None, HW, dp), lambda b, j: (b, 0, 0)),
            pl.BlockSpec((None, HW, dp), lambda b, j: (b, 0, 0)),
            pl.BlockSpec((4, dp, tn), lambda b, j: (0, 0, j)),
        ],
        out_specs=pl.BlockSpec((None, HW, tn), lambda b, j: (b, 0, j)),
        compiler_params=_compiler_params(pipeline_bytes),
        cost_estimate=pl.CostEstimate(
            flops=int(flops), transcendentals=int(B * cout),
            bytes_accessed=int(bytes_accessed)),
    )(quad, c6, c12, c18, w4)


# ----------------------------------------------------------------------------
# ASPP forward (Pallas path)
# ----------------------------------------------------------------------------
def aspp_forward_pallas(x_nchw, p, *, compute_dtype=jnp.float32):
    """Biases are dropped inside the kernels (non-affine InstanceNorm cancels
    per-channel constants); compute_dtype=bf16 stores weights + inter-kernel
    activations in bf16 (f32 accumulation, f32 IN/ReLU math)."""
    B, C, H, W = map(int, x_nchw.shape)
    dp = C // 2
    store = jnp.dtype(compute_dtype)

    x = jnp.transpose(x_nchw, (0, 2, 3, 1)).reshape(B, H * W, C).astype(store)

    # conv1 + the three branch-'a' 1x1 convs fused: one HBM read of x.
    wq = jnp.stack([p['conv1_w'], p['c6a_w'], p['c12a_w'], p['c18a_w']]).astype(store)
    quad = quad_pointwise_instnorm(x, wq)                    # (4, B, HW, dp)

    # Dilated 3x3 conv + IN per branch.
    def branch(idx, name, d):
        y = quad[idx].reshape(B, H, W, dp)
        w9 = p[f'{name}b_w'].reshape(9, dp, dp).astype(store)
        return dilated3x3_conv_instnorm(y, w9, d)

    c6 = branch(1, 'c6', 3)
    c12 = branch(2, 'c12', 6)
    c18 = branch(3, 'c18', 9)

    # fuse: channel concat folded into 4 accumulated matmuls inside the kernel;
    # the conv1 activation is read straight out of the quad output.
    w4 = p['fuse_w'].reshape(4, dp, 2 * C).astype(store)
    out = fuse_conv_instnorm(quad, c6, c12, c18, w4, out_dtype=x_nchw.dtype)
    return jnp.transpose(out.reshape(B, H, W, 2 * C), (0, 3, 1, 2))  # NCHW


# ----------------------------------------------------------------------------
# Pure-JAX reference (mirrors the PyTorch module semantics, biases included)
# ----------------------------------------------------------------------------
def aspp_forward_ref(x_nchw, p, eps=EPS):
    x = jnp.transpose(x_nchw, (0, 2, 3, 1))

    def pw(x, w, b):
        return jnp.einsum('bhwc,co->bhwo', x, w) + b

    def inorm(y):
        m = jnp.mean(y, axis=(1, 2), keepdims=True)
        v = jnp.mean(jnp.square(y - m), axis=(1, 2), keepdims=True)
        return (y - m) / jnp.sqrt(v + eps)

    def dconv(y, w_hwio, b, d):
        return lax.conv_general_dilated(
            y, w_hwio, window_strides=(1, 1), padding=((d, d), (d, d)),
            rhs_dilation=(d, d),
            dimension_numbers=('NHWC', 'HWIO', 'NHWC')) + b

    conv1 = inorm(pw(x, p['conv1_w'], p['conv1_b']))

    def branch(name, d):
        y = jax.nn.relu(inorm(pw(x, p[f'{name}a_w'], p[f'{name}a_b'])))
        return inorm(dconv(y, p[f'{name}b_w'], p[f'{name}b_b'], d))

    cat = jnp.concatenate(
        [conv1, branch('c6', 3), branch('c12', 6), branch('c18', 9)], axis=-1)
    out = inorm(pw(cat, p['fuse_w'], p['fuse_b']))
    return jnp.transpose(out, (0, 3, 1, 2))


# ----------------------------------------------------------------------------
# Deterministic parameter init (shapes from ASPP.__init__ with norm='in')
# ----------------------------------------------------------------------------
def init_params(key, dim):
    dp = dim // 2
    ks = jax.random.split(key, 16)

    def w(k, shape):
        return jax.random.normal(k, shape, jnp.float32) * 0.1

    p = {}
    p['conv1_w'], p['conv1_b'] = w(ks[0], (dim, dp)), w(ks[1], (dp,))
    for i, name in enumerate(['c6', 'c12', 'c18']):
        p[f'{name}a_w'] = w(ks[2 + 4 * i], (dim, dp))
        p[f'{name}a_b'] = w(ks[3 + 4 * i], (dp,))
        p[f'{name}b_w'] = w(ks[4 + 4 * i], (3, 3, dp, dp))   # HWIO
        p[f'{name}b_b'] = w(ks[5 + 4 * i], (dp,))
    p['fuse_w'], p['fuse_b'] = w(ks[14], (4 * dp, 2 * dim)), w(ks[15], (2 * dim,))
    return p


if __name__ == "__main__":
    key = jax.random.PRNGKey(0)
    kx, kp = jax.random.split(key)

    B, C, H, W = 2, 8, 16, 16          # dim=8 -> dim_part=4, output channels 2*dim=16
    x = jax.random.normal(kx, (B, C, H, W), jnp.float32)
    params = init_params(kp, C)

    ref = jax.block_until_ready(aspp_forward_ref(x, params))

    # f32 path: tight check against the full-precision reference.
    out = jax.block_until_ready(aspp_forward_pallas(x, params))
    assert out.shape == (B, 2 * C, H, W), out.shape
    assert bool(jnp.all(jnp.isfinite(out)))
    max_err = float(jnp.max(jnp.abs(out - ref)))
    assert max_err < 2e-2, f"f32 max abs err vs reference: {max_err}"

    # bf16 path (bf16 weights + intermediates in HBM, f32 accumulation/IN math).
    out_bf16 = jax.block_until_ready(
        aspp_forward_pallas(x, params, compute_dtype=jnp.bfloat16))
    assert bool(jnp.all(jnp.isfinite(out_bf16)))
    max_err_bf16 = float(jnp.max(jnp.abs(out_bf16 - ref)))
    assert max_err_bf16 < 0.5, f"bf16 max abs err vs reference: {max_err_bf16}"

    print("KERNEL_OK")
</pallas_src>

<mosaic_0001>
module attributes {stable_mosaic.version = 11 : i64} {
  func.func @_quad_pw_kernel(%arg0: i32, %arg1: i32, %arg2: memref<1x256x8xf32, #tpu.memory_space<vmem>>, %arg3: memref<1x8x4xf32, #tpu.memory_space<vmem>>, %arg4: memref<1x1x256x4xf32, #tpu.memory_space<vmem>>) attributes {dimension_semantics = [#tpu.dimension_semantics<parallel>, #tpu.dimension_semantics<parallel>], iteration_bounds = array<i64: 2, 4>, scalar_prefetch = 0 : i64, scratch_operands = 0 : i64, tpu.core_type = #tpu.core_type<tc>, window_params = [{transform_indices = @transform_0, window_bounds = array<i64: 1, 256, 8>}, {transform_indices = @transform_1, window_bounds = array<i64: 1, 8, 4>}, {transform_indices = @transform_2, window_bounds = array<i64: 1, 1, 256, 4>}]} {
    %c0 = arith.constant 0 : index
    %c0_0 = arith.constant 0 : index
    %c0_1 = arith.constant 0 : index
    %0 = vector.load %arg2[%c0, %c0_0, %c0_1] : memref<1x256x8xf32, #tpu.memory_space<vmem>>, vector<1x256x8xf32>
    %1 = vector.shape_cast %0 : vector<1x256x8xf32> to vector<256x8xf32>
    %c0_2 = arith.constant 0 : index
    %c0_3 = arith.constant 0 : index
    %c0_4 = arith.constant 0 : index
    %2 = vector.load %arg3[%c0_2, %c0_3, %c0_4] : memref<1x8x4xf32, #tpu.memory_space<vmem>>, vector<1x8x4xf32>
    %3 = vector.shape_cast %2 : vector<1x8x4xf32> to vector<8x4xf32>
    %cst = arith.constant dense<0.000000e+00> : vector<256x4xf32>
    %4 = tpu.matmul %1, %3, %cst {dimension_numbers = #tpu.dot_dimension_numbers<[1], [0], [0], [1], [0, 0, 1, 1], [], []>} : vector<256x8xf32>, vector<8x4xf32>, vector<256x4xf32> -> vector<256x4xf32>
    %cst_5 = arith.constant dense<0.000000e+00> : vector<4xf32>
    %5 = vector.multi_reduction <add>, %4, %cst_5 [0] : vector<256x4xf32> to vector<4xf32>
    %6 = vector.shape_cast %5 : vector<4xf32> to vector<1x4xf32>
    %cst_6 = arith.constant 3.906250e-03 : f32
    %7 = vector.broadcast %cst_6 : f32 to vector<1x4xf32>
    %8 = arith.mulf %6, %7 : vector<1x4xf32>
    %9 = vector.broadcast %8 : vector<1x4xf32> to vector<256x4xf32>
    %10 = arith.subf %4, %9 : vector<256x4xf32>
    %11 = arith.mulf %10, %10 : vector<256x4xf32>
    %cst_7 = arith.constant dense<0.000000e+00> : vector<4xf32>
    %12 = vector.multi_reduction <add>, %11, %cst_7 [0] : vector<256x4xf32> to vector<4xf32>
    %13 = vector.shape_cast %12 : vector<4xf32> to vector<1x4xf32>
    %cst_8 = arith.constant 3.906250e-03 : f32
    %14 = vector.broadcast %cst_8 : f32 to vector<1x4xf32>
    %15 = arith.mulf %13, %14 : vector<1x4xf32>
    %cst_9 = arith.constant 9.99999974E-6 : f32
    %16 = vector.broadcast %cst_9 : f32 to vector<1x4xf32>
    %17 = arith.addf %15, %16 : vector<1x4xf32>
    %18 = math.rsqrt %17 : vector<1x4xf32>
    %19 = vector.broadcast %18 : vector<1x4xf32> to vector<256x4xf32>
    %20 = arith.mulf %10, %19 : vector<256x4xf32>
    %c0_i32 = arith.constant 0 : i32
    %21 = arith.cmpi eq, %arg1, %c0_i32 : i32
    %22 = arith.extui %21 : i1 to i32
    %c0_i32_10 = arith.constant 0 : i32
    %23 = arith.cmpi ne, %22, %c0_i32_10 : i32
    scf.if %23 {
      %c0_13 = arith.constant 0 : index
      %c0_14 = arith.constant 0 : index
      %c0_15 = arith.constant 0 : index
      %c0_16 = arith.constant 0 : index
      %27 = vector.load %arg4[%c0_13, %c0_14, %c0_15, %c0_16] : memref<1x1x256x4xf32, #tpu.memory_space<vmem>>, vector<1x1x256x4xf32>
      %28 = vector.shape_cast %27 : vector<1x1x256x4xf32> to vector<256x4xf32>
      %29 = vector.shape_cast %20 : vector<256x4xf32> to vector<1x1x256x4xf32>
      tpu.vector_store %arg4[%c0_13, %c0_14, %c0_15, %c0_16], %29 {strides = array<i32>} : memref<1x1x256x4xf32, #tpu.memory_space<vmem>>, vector<1x1x256x4xf32>,
    } else {
    }
    %c0_i32_11 = arith.constant 0 : i32
    %24 = arith.cmpi sgt, %arg1, %c0_i32_11 : i32
    %25 = arith.extui %24 : i1 to i32
    %c0_i32_12 = arith.constant 0 : i32
    %26 = arith.cmpi ne, %25, %c0_i32_12 : i32
    scf.if %26 {
      %cst_13 = arith.constant 0.000000e+00 : f32
      %27 = vector.broadcast %cst_13 : f32 to vector<256x4xf32>
      %28 = arith.maximumf %20, %27 : vector<256x4xf32>
      %c0_14 = arith.constant 0 : index
      %c0_15 = arith.constant 0 : index
      %c0_16 = arith.constant 0 : index
      %c0_17 = arith.constant 0 : index
      %29 = vector.load %arg4[%c0_14, %c0_15, %c0_16, %c0_17] : memref<1x1x256x4xf32, #tpu.memory_space<vmem>>, vector<1x1x256x4xf32>
      %30 = vector.shape_cast %29 : vector<1x1x256x4xf32> to vector<256x4xf32>
      %31 = vector.shape_cast %28 : vector<256x4xf32> to vector<1x1x256x4xf32>
      tpu.vector_store %arg4[%c0_14, %c0_15, %c0_16, %c0_17], %31 {strides = array<i32>} : memref<1x1x256x4xf32, #tpu.memory_space<vmem>>, vector<1x1x256x4xf32>,
    } else {
    }
    return
  }
  func.func @transform_0(%arg0: i32, %arg1: i32) -> (i32, i32, i32) {
    %c0_i32 = arith.constant 0 : i32
    %c0_i32_0 = arith.constant 0 : i32
    %c0_i32_1 = arith.constant 0 : i32
    return %arg0, %c0_i32, %c0_i32_0 : i32, i32, i32
  }
  func.func @transform_1(%arg0: i32, %arg1: i32) -> (i32, i32, i32) {
    %c0_i32 = arith.constant 0 : i32
    %c0_i32_0 = arith.constant 0 : i32
    %c0_i32_1 = arith.constant 0 : i32
    return %arg1, %c0_i32, %c0_i32_0 : i32, i32, i32
  }
  func.func @transform_2(%arg0: i32, %arg1: i32) -> (i32, i32, i32, i32) {
    %c0_i32 = arith.constant 0 : i32
    %c0_i32_0 = arith.constant 0 : i32
    %c0_i32_1 = arith.constant 0 : i32
    return %arg1, %arg0, %c0_i32, %c0_i32_0 : i32, i32, i32, i32
  }
}

</mosaic_0001>

<llo_original>
// kernel: tpu_custom_call.1
$region0: #{tpu_custom_call.1}
  #allocation0 [shape = 'u32[]', space=smem, size = 0x4, offset = 0x4, fixed_abs, tag = 'smem constant byte address 0x4 - core index']
  #allocation1 [shape = 'u32[144,128]{1,0:T(1,128)}', space=vmem, size = 0x12000, scoped, tag = 'internal scratch']
  %s0 = inlined_call_operand.vmem [shape: f32[2,256,8], index: 0, kind: input, shape index: {}]
  %s1 = inlined_call_operand.vmem [shape: f32[4,8,4], index: 1, kind: input, shape index: {}]
  %s2 = inlined_call_operand.vmem [shape: f32[4,2,256,4], index: 2, kind: output, shape index: {}]
  %s3 = sld [smem:[#allocation0]]
  $region49: #{tpu_custom_call.1} parent=0
    _
  %s5 = ssub.s32 1, %s3
  %s6 = scalar_select 0, %s5, %s3
  loop: start=0, step=1, limit=10
  $region2: #{tpu_custom_call.1} parent=0 // loop_pre_header
    _
  $region3: #{tpu_custom_call.1} parent=0 // loop_header
    %s8 = sphi 0, %s12
    %p9 = scmp.ge.s32.totalorder %s8, 10
    %s15 = sphi 0, %s27
    %s16 = sphi 0, %s23
    %s17 = sphi 0, %s15
    %s18 = sphi 0, %s16
    %s19 = sphi 0, %s17
    %s20 = sphi 0, %s18
    %s30 = sphi 0, %s32
    %s33 = sphi 0, %s30
    %s34 = sphi 0, %s33
    %s50 = sphi 0, %s34
    %s56 = sphi 0, %s58
    %s59 = sphi 0, %s56
    %s60 = sphi 0, %s59
    %s76 = sphi 0, %s60
    %s84 = sphi 0, %s86
    %s87 = sphi 0, %s84
    %s88 = sphi 0, %s87
    %s104 = sphi 0, %s88
  $region4: #{tpu_custom_call.1} parent=0 // loop_header_branch
    %11 = sbr.rel (%p9) target = $region8
  $region5: #{tpu_custom_call.1} parent=0 // loop_body
    %s13 = ssub.s32 %s8, 1
    %s14 = ssub.s32 %s8, 2
    %s21 = sadd.s32 1, %s16
    %p22 = scmp.ge.s32.totalorder %s21, 4
    %s23 = scalar_select %p22, 0, %s21
    %s24 = sadd.s32 1, %s15
    %s25 = scalar_select %p22, %s24, %s15
    %p26 = scmp.ge.s32.totalorder %s25, 2
    %s27 = scalar_select %p26, 0, %s25
    %s28 = ssub.s32 %s15, %s27
    %p29 = scmp.eq.s32.totalorder %s28, 0
    %s31 = sadd.s32 %s30, 1
    %s32 = scalar_select %p29, %s30, %s31
    %p35 = pneg %p29
    %p36 = scmp.eq.s32.totalorder %s8, 7
    %p37 = por %p35, %p36
    %p38 = scmp.ne.s32.totalorder %s30, %s33
    %p39 = scmp.eq.s32.totalorder %s8, 0
    %p40 = por %p38, %p39
    %p41 = scmp.ne.s32.totalorder %s30, %s33
    %p42 = scmp.eq.s32.totalorder %s13, 7
    %p43 = por %p41, %p42
    %p44 = scmp.ne.s32.totalorder %s33, %s34
    %p45 = scmp.eq.s32.totalorder %s13, 0
    %p46 = por %p44, %p45
    %p47 = scmp.ne.s32.totalorder %s33, %s34
    %p48 = scmp.eq.s32.totalorder %s14, 7
    %p49 = por %p47, %p48
    %p51 = scmp.ne.s32.totalorder %s34, %s50
    %p52 = scmp.eq.s32.totalorder %s14, 0
    %p53 = por %p51, %p52
    %s54 = ssub.s32 %s16, %s23
    %p55 = scmp.eq.s32.totalorder %s54, 0
    %s57 = sadd.s32 %s56, 1
    %s58 = scalar_select %p55, %s56, %s57
    %p61 = pneg %p55
    %p62 = scmp.eq.s32.totalorder %s8, 7
    %p63 = por %p61, %p62
    %p64 = scmp.ne.s32.totalorder %s56, %s59
    %p65 = scmp.eq.s32.totalorder %s8, 0
    %p66 = por %p64, %p65
    %p67 = scmp.ne.s32.totalorder %s56, %s59
    %p68 = scmp.eq.s32.totalorder %s13, 7
    %p69 = por %p67, %p68
    %p70 = scmp.ne.s32.totalorder %s59, %s60
    %p71 = scmp.eq.s32.totalorder %s13, 0
    %p72 = por %p70, %p71
    %p73 = scmp.ne.s32.totalorder %s59, %s60
    %p74 = scmp.eq.s32.totalorder %s14, 7
    %p75 = por %p73, %p74
    %p77 = scmp.ne.s32.totalorder %s60, %s76
    %p78 = scmp.eq.s32.totalorder %s14, 0
    %p79 = por %p77, %p78
    %s80 = ssub.s32 %s16, %s23
    %s81 = ssub.s32 %s15, %s27
    %s82 = sor.u32 %s80, %s81
    %p83 = scmp.eq.s32.totalorder %s82, 0
    %s85 = sadd.s32 %s84, 1
    %s86 = scalar_select %p83, %s84, %s85
    %p89 = pneg %p83
    %p90 = scmp.eq.s32.totalorder %s8, 7
    %p91 = por %p89, %p90
    %p92 = scmp.ne.s32.totalorder %s84, %s87
    %p93 = scmp.eq.s32.totalorder %s8, 0
    %p94 = por %p92, %p93
    %p95 = scmp.ne.s32.totalorder %s84, %s87
    %p96 = scmp.eq.s32.totalorder %s13, 7
    %p97 = por %p95, %p96
    %p98 = scmp.ne.s32.totalorder %s87, %s88
    %p99 = scmp.eq.s32.totalorder %s13, 0
    %p100 = por %p98, %p99
    %p101 = scmp.ne.s32.totalorder %s87, %s88
    %p102 = scmp.eq.s32.totalorder %s14, 7
    %p103 = por %p101, %p102
    %p105 = scmp.ne.s32.totalorder %s88, %s104
    %p106 = scmp.eq.s32.totalorder %s14, 0
    %p107 = por %p105, %p106
    %p108 = scmp.le.s32.totalorder 1, %s8
    %p109 = scmp.lt.s32.totalorder %s8, 9
    %p110 = pnand %p108, %p109
    %p111 = pneg %p110
    // Predicated region
    $region9: #{tpu_custom_call.1} parent=5 // pred_check
      _
    $region10: #{tpu_custom_call.1} parent=5 // pred_check_branch
      %113 = sbr.rel (%p110) target = $region12
    $region11: #{tpu_custom_call.1} parent=5 // pred_region
      %s114 = ssub.s32 %s8, 1
    $region12: #{tpu_custom_call.1} parent=5 // pred_fallthru
      _
    %p115 = scmp.lt.s32.totalorder %s8, 8
    // Predicated region
    $region13: #{tpu_custom_call.1} parent=5 // pred_check
      %p116 = pneg %p115
    $region14: #{tpu_custom_call.1} parent=5 // pred_check_branch
      %118 = sbr.rel (%p116) target = $region16
    $region15: #{tpu_custom_call.1} parent=5 // pred_region
      // Predicated region
      $region17: #{tpu_custom_call.1} parent=15 // pred_check
        %p119 = pneg %p40
      $region18: #{tpu_custom_call.1} parent=15 // pred_check_branch
        %121 = sbr.rel (%p119) target = $region20
      $region19: #{tpu_custom_call.1} parent=15 // pred_region
        %p122 = scmp.lt.s32.totalorder %s15, 1
        %s123 = scalar_select %p122, %s15, 1
        %s124 = smul.addr %s123, 32
        %s125 = smul.addr %s124, 8
        %s126 = scalar_lea.vmem %s0, %s125
      $region20: #{tpu_custom_call.1} parent=15 // pred_fallthru
        _
      // Predicated region
      $region21: #{tpu_custom_call.1} parent=15 // pred_check
        %p127 = pneg %p66
      $region22: #{tpu_custom_call.1} parent=15 // pred_check_branch
        %129 = sbr.rel (%p127) target = $region24
      $region23: #{tpu_custom_call.1} parent=15 // pred_region
        %p130 = scmp.lt.s32.totalorder %s16, 3
        %s131 = scalar_select %p130, %s16, 3
        %s132 = smul.addr %s131, 8
        %s133 = scalar_lea.vmem %s1, %s132
      $region24: #{tpu_custom_call.1} parent=15 // pred_fallthru
        _
    $region16: #{tpu_custom_call.1} parent=5 // pred_fallthru
      _
    %p134 = scmp.le.s32.totalorder 1, %s8
    %p135 = scmp.lt.s32.totalorder %s8, 9
    %p136 = pnand %p134, %p135
    %p137 = pneg %p136
    // Predicated region
    $region25: #{tpu_custom_call.1} parent=5 // pred_check
      _
    $region26: #{tpu_custom_call.1} parent=5 // pred_check_branch
      %139 = sbr.rel (%p136) target = $region28
    $region27: #{tpu_custom_call.1} parent=5 // pred_region
      %s140 = ssub.s32 %s8, 1
      %p141 = scmp.lt.s32.totalorder %s17, 1
      %s142 = scalar_select %p141, %s17, 1
      %s143 = smul.addr %s142, 32
      %s144 = smul.addr %s143, 8
      %s145 = scalar_lea.vmem %s0, %s144
      %p146 = pneg %p46
      %p147 = pneg %p43
      %p148 = scmp.lt.s32.totalorder %s18, 3
      %s149 = scalar_select %p148, %s18, 3
      %s150 = smul.addr %s149, 8
      %s151 = scalar_lea.vmem %s1, %s150
      %p152 = pneg %p72
      %p153 = pneg %p69
      %p154 = pneg %p100
      %p155 = pneg %p97
      %p156 = scmp.lt.s32.totalorder %s18, 3
      %s157 = scalar_select %p156, %s18, 3
      %p158 = scmp.lt.s32.totalorder %s17, 1
      %s159 = scalar_select %p158, %s17, 1
      %s160 = smul.addr %s159, 32
      %s161 = smul.addr %s157, 64
      %s162 = sadd.s32 %s160, %s161
      %s163 = smul.addr %s162, 8
      %s164 = scalar_lea.vmem %s2, %s163
      %p165 = scmp.lt.s32.totalorder %s17, 1
      %s166 = scalar_select %p165, %s17, 1
      %s167 = smul.addr %s166, 32
      %s168 = smul.addr %s167, 8
      %s169 = scalar_lea.vmem %s0, %s168
      %p170 = scmp.lt.s32.totalorder %s18, 3
      %s171 = scalar_select %p170, %s18, 3
      %s172 = smul.addr %s171, 8
      %s173 = scalar_lea.vmem %s1, %s172
      %p174 = scmp.lt.s32.totalorder %s18, 3
      %s175 = scalar_select %p174, %s18, 3
      %p176 = scmp.lt.s32.totalorder %s17, 1
      %s177 = scalar_select %p176, %s17, 1
      %s178 = smul.addr %s177, 32
      %s179 = smul.addr %s175, 64
      %s180 = sadd.s32 %s178, %s179
      %s181 = smul.addr %s180, 8
      %s182 = scalar_lea.vmem %s2, %s181
      %v183 = vld [vmem:[%s169] sm:$0xff]
      %v184 = vld [vmem:[%s169 + $0x8] sm:$0xff]
      %v185 = vld [vmem:[%s169 + $0x10] sm:$0xff]
      %v186 = vld [vmem:[%s169 + $0x18] sm:$0xff]
      %v187 = vld [vmem:[%s169 + $0x20] sm:$0xff]
      %v188 = vld [vmem:[%s169 + $0x28] sm:$0xff]
      %v189 = vld [vmem:[%s169 + $0x30] sm:$0xff]
      %v190 = vld [vmem:[%s169 + $0x38] sm:$0xff]
      %v191 = vld [vmem:[%s169 + $0x40] sm:$0xff]
      %v192 = vld [vmem:[%s169 + $0x48] sm:$0xff]
      %v193 = vld [vmem:[%s169 + $0x50] sm:$0xff]
      %v194 = vld [vmem:[%s169 + $0x58] sm:$0xff]
      %v195 = vld [vmem:[%s169 + $0x60] sm:$0xff]
      %v196 = vld [vmem:[%s169 + $0x68] sm:$0xff]
      %v197 = vld [vmem:[%s169 + $0x70] sm:$0xff]
      %v198 = vld [vmem:[%s169 + $0x78] sm:$0xff]
      %v199 = vld [vmem:[%s169 + $0x80] sm:$0xff]
      %v200 = vld [vmem:[%s169 + $0x88] sm:$0xff]
      %v201 = vld [vmem:[%s169 + $0x90] sm:$0xff]
      %v202 = vld [vmem:[%s169 + $0x98] sm:$0xff]
      %v203 = vld [vmem:[%s169 + $0xa0] sm:$0xff]
      %v204 = vld [vmem:[%s169 + $0xa8] sm:$0xff]
      %v205 = vld [vmem:[%s169 + $0xb0] sm:$0xff]
      %v206 = vld [vmem:[%s169 + $0xb8] sm:$0xff]
      %v207 = vld [vmem:[%s169 + $0xc0] sm:$0xff]
      %v208 = vld [vmem:[%s169 + $0xc8] sm:$0xff]
      %v209 = vld [vmem:[%s169 + $0xd0] sm:$0xff]
      %v210 = vld [vmem:[%s169 + $0xd8] sm:$0xff]
      %v211 = vld [vmem:[%s169 + $0xe0] sm:$0xff]
      %v212 = vld [vmem:[%s169 + $0xe8] sm:$0xff]
      %v213 = vld [vmem:[%s169 + $0xf0] sm:$0xff]
      %v214 = vld [vmem:[%s169 + $0xf8] sm:$0xff]
      %v215 = vld [vmem:[%s173] sm:$0xff]
      %vm216 = vcmask 64512
      %v218 = vsel %vm216, %v183, 0
      %v221 = vsel %vm216, %v184, 0
      %v224 = vsel %vm216, %v185, 0
      %v227 = vsel %vm216, %v186, 0
      %v230 = vsel %vm216, %v187, 0
      %v233 = vsel %vm216, %v188, 0
      %v236 = vsel %vm216, %v189, 0
      %v239 = vsel %vm216, %v190, 0
      %v242 = vsel %vm216, %v191, 0
      %v245 = vsel %vm216, %v192, 0
      %v248 = vsel %vm216, %v193, 0
      %v251 = vsel %vm216, %v194, 0
      %v254 = vsel %vm216, %v195, 0
      %v257 = vsel %vm216, %v196, 0
      %v260 = vsel %vm216, %v197, 0
      %v263 = vsel %vm216, %v198, 0
      %v266 = vsel %vm216, %v199, 0
      %v269 = vsel %vm216, %v200, 0
      %v272 = vsel %vm216, %v201, 0
      %v275 = vsel %vm216, %v202, 0
      %v278 = vsel %vm216, %v203, 0
      %v281 = vsel %vm216, %v204, 0
      %v284 = vsel %vm216, %v205, 0
      %v287 = vsel %vm216, %v206, 0
      %v290 = vsel %vm216, %v207, 0
      %v293 = vsel %vm216, %v208, 0
      %v296 = vsel %vm216, %v209, 0
      %v299 = vsel %vm216, %v210, 0
      %v302 = vsel %vm216, %v211, 0
      %v305 = vsel %vm216, %v212, 0
      %v308 = vsel %vm216, %v213, 0
      %v311 = vsel %vm216, %v214, 0
      %313 = vmatprep.subr.mxu0 0.0
      %314 = vmatpush1.msra.mxu0 %v215
      %315 = vmatprep.subr.mxu0 0.0
      %316 = vmatpush1.msra.mxu0 0.0
      %317 = vmatprep.subr.mxu0 0.0
      %318 = vmatpush1.msra.mxu0 0.0
      %319 = vmatprep.subr.mxu0 0.0
      %320 = vmatpush1.msra.mxu0 0.0
      %321 = vmatprep.subr.mxu0 0.0
      %322 = vmatpush1.msra.mxu0 0.0
      %323 = vmatprep.subr.mxu0 0.0
      %324 = vmatpush1.msra.mxu0 0.0
      %325 = vmatprep.subr.mxu0 0.0
      %326 = vmatpush1.msra.mxu0 0.0
      %327 = vmatprep.subr.mxu0 0.0
      %328 = vmatpush1.msra.mxu0 0.0
      %329 = vmatprep.subr.mxu0 0.0
      %330 = vmatpush1.msra.mxu0 0.0
      %331 = vmatprep.subr.mxu0 0.0
      %332 = vmatpush1.msra.mxu0 0.0
      %333 = vmatprep.subr.mxu0 0.0
      %334 = vmatpush1.msra.mxu0 0.0
      %335 = vmatprep.subr.mxu0 0.0
      %336 = vmatpush1.msra.mxu0 0.0
      %337 = vmatprep.subr.mxu0 0.0
      %338 = vmatpush1.msra.mxu0 0.0
      %339 = vmatprep.subr.mxu0 0.0
      %340 = vmatpush1.msra.mxu0 0.0
      %341 = vmatprep.subr.mxu0 0.0
      %342 = vmatpush1.msra.mxu0 0.0
      %343 = vmatprep.subr.mxu0 0.0
      %344 = vmatpush1.msra.mxu0 0.0
      %345 = vmatprep.subr.mxu0 0.0
      %346 = vmatpush1.msra.mxu0 0.0
      %347 = vmatprep.subr.mxu0 0.0
      %348 = vmatpush1.msra.mxu0 0.0
      %349 = vmatprep.subr.mxu0 0.0
      %350 = vmatpush1.msra.mxu0 0.0
      %351 = vmatprep.subr.mxu0 0.0
      %352 = vmatpush1.msra.mxu0 0.0
      %353 = vmatprep.subr.mxu0 0.0
      %354 = vmatpush1.msra.mxu0 0.0
      %355 = vmatprep.subr.mxu0 0.0
      %356 = vmatpush1.msra.mxu0 0.0
      %357 = vmatprep.subr.mxu0 0.0
      %358 = vmatpush1.msra.mxu0 0.0
      %359 = vmatprep.subr.mxu0 0.0
      %360 = vmatpush1.msra.mxu0 0.0
      %361 = vmatprep.subr.mxu0 0.0
      %362 = vmatpush1.msra.mxu0 0.0
      %363 = vmatprep.subr.mxu0 0.0
      %364 = vmatpush1.msra.mxu0 0.0
      %365 = vmatprep.subr.mxu0 0.0
      %366 = vmatpush1.msra.mxu0 0.0
      %367 = vmatprep.subr.mxu0 0.0
      %368 = vmatpush1.msra.mxu0 0.0
      %369 = vmatprep.subr.mxu0 0.0
      %370 = vmatpush1.msra.mxu0 0.0
      %371 = vmatprep.subr.mxu0 0.0
      %372 = vmatpush1.msra.mxu0 0.0
      %373 = vmatprep.subr.mxu0 0.0
      %374 = vmatpush1.msra.mxu0 0.0
      %375 = vmatprep.subr.mxu0 0.0
      %376 = vmatpush1.msra.mxu0 0.0
      %377 = vmatprep.mubr.f32.mxu0 0.0
      %378 = vmatmul.mubr.f32.gmra.mrb[0].mxu0 %v218
      %v379 = vpop.f32.mrb[0].mxu0
      %v380 = vadd.f32 0.0, %v379
      %v381 = vpop.f32.mrb[0].mxu0
      %382 = vmatprep.mubr.f32.mxu0 0.0
      %383 = vmatmul.mubr.f32.gmra.mrb[0].mxu0 %v221
      %v384 = vpop.f32.mrb[0].mxu0
      %v385 = vadd.f32 0.0, %v384
      %v386 = vpop.f32.mrb[0].mxu0
      %387 = vmatprep.mubr.f32.mxu0 0.0
      %388 = vmatmul.mubr.f32.gmra.mrb[0].mxu0 %v224
      %v389 = vpop.f32.mrb[0].mxu0
      %v390 = vadd.f32 0.0, %v389
      %v391 = vpop.f32.mrb[0].mxu0
      %392 = vmatprep.mubr.f32.mxu0 0.0
      %393 = vmatmul.mubr.f32.gmra.mrb[0].mxu0 %v227
      %v394 = vpop.f32.mrb[0].mxu0
      %v395 = vadd.f32 0.0, %v394
      %v396 = vpop.f32.mrb[0].mxu0
      %397 = vmatprep.mubr.f32.mxu0 0.0
      %398 = vmatmul.mubr.f32.gmra.mrb[0].mxu0 %v230
      %v399 = vpop.f32.mrb[0].mxu0
      %v400 = vadd.f32 0.0, %v399
      %v401 = vpop.f32.mrb[0].mxu0
      %402 = vmatprep.mubr.f32.mxu0 0.0
      %403 = vmatmul.mubr.f32.gmra.mrb[0].mxu0 %v233
      %v404 = vpop.f32.mrb[0].mxu0
      %v405 = vadd.f32 0.0, %v404
      %v406 = vpop.f32.mrb[0].mxu0
      %407 = vmatprep.mubr.f32.mxu0 0.0
      %408 = vmatmul.mubr.f32.gmra.mrb[0].mxu0 %v236
      %v409 = vpop.f32.mrb[0].mxu0
      %v410 = vadd.f32 0.0, %v409
      %v411 = vpop.f32.mrb[0].mxu0
      %412 = vmatprep.mubr.f32.mxu0 0.0
      %413 = vmatmul.mubr.f32.gmra.mrb[0].mxu0 %v239
      %v414 = vpop.f32.mrb[0].mxu0
      %v415 = vadd.f32 0.0, %v414
      %v416 = vpop.f32.mrb[0].mxu0
      %417 = vmatprep.mubr.f32.mxu0 0.0
      %418 = vmatmul.mubr.f32.gmra.mrb[0].mxu0 %v242
      %v419 = vpop.f32.mrb[0].mxu0
      %v420 = vadd.f32 0.0, %v419
      %v421 = vpop.f32.mrb[0].mxu0
      %422 = vmatprep.mubr.f32.mxu0 0.0
      %423 = vmatmul.mubr.f32.gmra.mrb[0].mxu0 %v245
      %v424 = vpop.f32.mrb[0].mxu0
      %v425 = vadd.f32 0.0, %v424
      %v426 = vpop.f32.mrb[0].mxu0
      %427 = vmatprep.mubr.f32.mxu0 0.0
      %428 = vmatmul.mubr.f32.gmra.mrb[0].mxu0 %v248
      %v429 = vpop.f32.mrb[0].mxu0
      %v430 = vadd.f32 0.0, %v429
      %v431 = vpop.f32.mrb[0].mxu0
      %432 = vmatprep.mubr.f32.mxu0 0.0
      %433 = vmatmul.mubr.f32.gmra.mrb[0].mxu0 %v251
      %v434 = vpop.f32.mrb[0].mxu0
      %v435 = vadd.f32 0.0, %v434
      %v436 = vpop.f32.mrb[0].mxu0
      %437 = vmatprep.mubr.f32.mxu0 0.0
      %438 = vmatmul.mubr.f32.gmra.mrb[0].mxu0 %v254
      %v439 = vpop.f32.mrb[0].mxu0
      %v440 = vadd.f32 0.0, %v439
      %v441 = vpop.f32.mrb[0].mxu0
      %442 = vmatprep.mubr.f32.mxu0 0.0
      %443 = vmatmul.mubr.f32.gmra.mrb[0].mxu0 %v257
      %v444 = vpop.f32.mrb[0].mxu0
      %v445 = vadd.f32 0.0, %v444
      %v446 = vpop.f32.mrb[0].mxu0
      %447 = vmatprep.mubr.f32.mxu0 0.0
      %448 = vmatmul.mubr.f32.gmra.mrb[0].mxu0 %v260
      %v449 = vpop.f32.mrb[0].mxu0
      %v450 = vadd.f32 0.0, %v449
      %v451 = vpop.f32.mrb[0].mxu0
      %452 = vmatprep.mubr.f32.mxu0 0.0
      %453 = vmatmul.mubr.f32.gmra.mrb[0].mxu0 %v263
      %v454 = vpop.f32.mrb[0].mxu0
      %v455 = vadd.f32 0.0, %v454
      %v456 = vpop.f32.mrb[0].mxu0
      %457 = vmatprep.mubr.f32.mxu0 0.0
      %458 = vmatmul.mubr.f32.gmra.mrb[0].mxu0 %v266
      %v459 = vpop.f32.mrb[0].mxu0
      %v460 = vadd.f32 0.0, %v459
      %v461 = vpop.f32.mrb[0].mxu0
      %462 = vmatprep.mubr.f32.mxu0 0.0
      %463 = vmatmul.mubr.f32.gmra.mrb[0].mxu0 %v269
      %v464 = vpop.f32.mrb[0].mxu0
      %v465 = vadd.f32 0.0, %v464
      %v466 = vpop.f32.mrb[0].mxu0
      %467 = vmatprep.mubr.f32.mxu0 0.0
      %468 = vmatmul.mubr.f32.gmra.mrb[0].mxu0 %v272
      %v469 = vpop.f32.mrb[0].mxu0
      %v470 = vadd.f32 0.0, %v469
      %v471 = vpop.f32.mrb[0].mxu0
      %472 = vmatprep.mubr.f32.mxu0 0.0
      %473 = vmatmul.mubr.f32.gmra.mrb[0].mxu0 %v275
      %v474 = vpop.f32.mrb[0].mxu0
      %v475 = vadd.f32 0.0, %v474
      %v476 = vpop.f32.mrb[0].mxu0
      %477 = vmatprep.mubr.f32.mxu0 0.0
      %478 = vmatmul.mubr.f32.gmra.mrb[0].mxu0 %v278
      %v479 = vpop.f32.mrb[0].mxu0
      %v480 = vadd.f32 0.0, %v479
      %v481 = vpop.f32.mrb[0].mxu0
      %482 = vmatprep.mubr.f32.mxu0 0.0
      %483 = vmatmul.mubr.f32.gmra.mrb[0].mxu0 %v281
      %v484 = vpop.f32.mrb[0].mxu0
      %v485 = vadd.f32 0.0, %v484
      %v486 = vpop.f32.mrb[0].mxu0
      %487 = vmatprep.mubr.f32.mxu0 0.0
      %488 = vmatmul.mubr.f32.gmra.mrb[0].mxu0 %v284
      %v489 = vpop.f32.mrb[0].mxu0
      %v490 = vadd.f32 0.0, %v489
      %v491 = vpop.f32.mrb[0].mxu0
      %492 = vmatprep.mubr.f32.mxu0 0.0
      %493 = vmatmul.mubr.f32.gmra.mrb[0].mxu0 %v287
      %v494 = vpop.f32.mrb[0].mxu0
      %v495 = vadd.f32 0.0, %v494
      %v496 = vpop.f32.mrb[0].mxu0
      %497 = vmatprep.mubr.f32.mxu0 0.0
      %498 = vmatmul.mubr.f32.gmra.mrb[0].mxu0 %v290
      %v499 = vpop.f32.mrb[0].mxu0
      %v500 = vadd.f32 0.0, %v499
      %v501 = vpop.f32.mrb[0].mxu0
      %502 = vmatprep.mubr.f32.mxu0 0.0
      %503 = vmatmul.mubr.f32.gmra.mrb[0].mxu0 %v293
      %v504 = vpop.f32.mrb[0].mxu0
      %v505 = vadd.f32 0.0, %v504
      %v506 = vpop.f32.mrb[0].mxu0
      %507 = vmatprep.mubr.f32.mxu0 0.0
      %508 = vmatmul.mubr.f32.gmra.mrb[0].mxu0 %v296
      %v509 = vpop.f32.mrb[0].mxu0
      %v510 = vadd.f32 0.0, %v509
      %v511 = vpop.f32.mrb[0].mxu0
      %512 = vmatprep.mubr.f32.mxu0 0.0
      %513 = vmatmul.mubr.f32.gmra.mrb[0].mxu0 %v299
      %v514 = vpop.f32.mrb[0].mxu0
      %v515 = vadd.f32 0.0, %v514
      %v516 = vpop.f32.mrb[0].mxu0
      %517 = vmatprep.mubr.f32.mxu0 0.0
      %518 = vmatmul.mubr.f32.gmra.mrb[0].mxu0 %v302
      %v519 = vpop.f32.mrb[0].mxu0
      %v520 = vadd.f32 0.0, %v519
      %v521 = vpop.f32.mrb[0].mxu0
      %522 = vmatprep.mubr.f32.mxu0 0.0
      %523 = vmatmul.mubr.f32.gmra.mrb[0].mxu0 %v305
      %v524 = vpop.f32.mrb[0].mxu0
      %v525 = vadd.f32 0.0, %v524
      %v526 = vpop.f32.mrb[0].mxu0
      %527 = vmatprep.mubr.f32.mxu0 0.0
      %528 = vmatmul.mubr.f32.gmra.mrb[0].mxu0 %v308
      %v529 = vpop.f32.mrb[0].mxu0
      %v530 = vadd.f32 0.0, %v529
      %v531 = vpop.f32.mrb[0].mxu0
      %532 = vmatprep.mubr.f32.mxu0 0.0
      %533 = vmatmul.mubr.f32.gmra.mrb[0].mxu0 %v311
      %v534 = vpop.f32.mrb[0].mxu0
      %v535 = vadd.f32 0.0, %v534
      %v536 = vpop.f32.mrb[0].mxu0
      %537 = vdwg.mxu0
      %vm538 = vcmask 31744
      %v539 = vsel %vm538, %v380, 0.0
      %v540 = vsel %vm538, %v385, 0.0
      %v541 = vadd.f32 %v539, %v540
      %v542 = vsel %vm538, %v390, 0.0
      %v543 = vadd.f32 %v541, %v542
      %v544 = vsel %vm538, %v395, 0.0
      %v545 = vadd.f32 %v543, %v544
      %v546 = vsel %vm538, %v400, 0.0
      %v547 = vadd.f32 %v545, %v546
      %v548 = vsel %vm538, %v405, 0.0
      %v549 = vadd.f32 %v547, %v548
      %v550 = vsel %vm538, %v410, 0.0
      %v551 = vadd.f32 %v549, %v550
      %v552 = vsel %vm538, %v415, 0.0
      %v553 = vadd.f32 %v551, %v552
      %v554 = vsel %vm538, %v420, 0.0
      %v555 = vadd.f32 %v553, %v554
      %v556 = vsel %vm538, %v425, 0.0
      %v557 = vadd.f32 %v555, %v556
      %v558 = vsel %vm538, %v430, 0.0
      %v559 = vadd.f32 %v557, %v558
      %v560 = vsel %vm538, %v435, 0.0
      %v561 = vadd.f32 %v559, %v560
      %v562 = vsel %vm538, %v440, 0.0
      %v563 = vadd.f32 %v561, %v562
      %v564 = vsel %vm538, %v445, 0.0
      %v565 = vadd.f32 %v563, %v564
      %v566 = vsel %vm538, %v450, 0.0
      %v567 = vadd.f32 %v565, %v566
      %v568 = vsel %vm538, %v455, 0.0
      %v569 = vadd.f32 %v567, %v568
      %v570 = vsel %vm538, %v460, 0.0
      %v571 = vadd.f32 %v569, %v570
      %v572 = vsel %vm538, %v465, 0.0
      %v573 = vadd.f32 %v571, %v572
      %v574 = vsel %vm538, %v470, 0.0
      %v575 = vadd.f32 %v573, %v574
      %v576 = vsel %vm538, %v475, 0.0
      %v577 = vadd.f32 %v575, %v576
      %v578 = vsel %vm538, %v480, 0.0
      %v579 = vadd.f32 %v577, %v578
      %v580 = vsel %vm538, %v485, 0.0
      %v581 = vadd.f32 %v579, %v580
      %v582 = vsel %vm538, %v490, 0.0
      %v583 = vadd.f32 %v581, %v582
      %v584 = vsel %vm538, %v495, 0.0
      %v585 = vadd.f32 %v583, %v584
      %v586 = vsel %vm538, %v500, 0.0
      %v587 = vadd.f32 %v585, %v586
      %v588 = vsel %vm538, %v505, 0.0
      %v589 = vadd.f32 %v587, %v588
      %v590 = vsel %vm538, %v510, 0.0
      %v591 = vadd.f32 %v589, %v590
      %v592 = vsel %vm538, %v515, 0.0
      %v593 = vadd.f32 %v591, %v592
      %v594 = vsel %vm538, %v520, 0.0
      %v595 = vadd.f32 %v593, %v594
      %v596 = vsel %vm538, %v525, 0.0
      %v597 = vadd.f32 %v595, %v596
      %v598 = vsel %vm538, %v530, 0.0
      %v599 = vadd.f32 %v597, %v598
      %v600 = vsel %vm538, %v535, 0.0
      %v601 = vadd.f32 %v599, %v600
      %v602 = vrot.slane %v601, 4
      %v603 = vadd.f32 %v601, %v602
      %v604 = vrot.slane %v603, 2
      %v605 = vadd.f32 %v603, %v604
      %v606 = vrot.slane %v605, 1
      %v607 = vadd.f32 %v605, %v606
      %v608 = vmul.f32 %v607, 0.00390625
      %v609 = vsub.f32 %v380, %v608
      %v610 = vsub.f32 %v385, %v608
      %v611 = vsub.f32 %v390, %v608
      %v612 = vsub.f32 %v395, %v608
      %v613 = vsub.f32 %v400, %v608
      %v614 = vsub.f32 %v405, %v608
      %v615 = vsub.f32 %v410, %v608
      %v616 = vsub.f32 %v415, %v608
      %v617 = vsub.f32 %v420, %v608
      %v618 = vsub.f32 %v425, %v608
      %v619 = vsub.f32 %v430, %v608
      %v620 = vsub.f32 %v435, %v608
      %v621 = vsub.f32 %v440, %v608
      %v622 = vsub.f32 %v445, %v608
      %v623 = vsub.f32 %v450, %v608
      %v624 = vsub.f32 %v455, %v608
      %v625 = vsub.f32 %v460, %v608
      %v626 = vsub.f32 %v465, %v608
      %v627 = vsub.f32 %v470, %v608
      %v628 = vsub.f32 %v475, %v608
      %v629 = vsub.f32 %v480, %v608
      %v630 = vsub.f32 %v485, %v608
      %v631 = vsub.f32 %v490, %v608
      %v632 = vsub.f32 %v495, %v608
      %v633 = vsub.f32 %v500, %v608
      %v634 = vsub.f32 %v505, %v608
      %v635 = vsub.f32 %v510, %v608
      %v636 = vsub.f32 %v515, %v608
      %v637 = vsub.f32 %v520, %v608
      %v638 = vsub.f32 %v525, %v608
      %v639 = vsub.f32 %v530, %v608
      %v640 = vsub.f32 %v535, %v608
      %v641 = vmul.f32 %v609, %v609
      %v642 = vmul.f32 %v610, %v610
      %v643 = vmul.f32 %v611, %v611
      %v644 = vmul.f32 %v612, %v612
      %v645 = vmul.f32 %v613, %v613
      %v646 = vmul.f32 %v614, %v614
      %v647 = vmul.f32 %v615, %v615
      %v648 = vmul.f32 %v616, %v616
      %v649 = vmul.f32 %v617, %v617
      %v650 = vmul.f32 %v618, %v618
      %v651 = vmul.f32 %v619, %v619
      %v652 = vmul.f32 %v620, %v620
      %v653 = vmul.f32 %v621, %v621
      %v654 = vmul.f32 %v622, %v622
      %v655 = vmul.f32 %v623, %v623
      %v656 = vmul.f32 %v624, %v624
      %v657 = vmul.f32 %v625, %v625
      %v658 = vmul.f32 %v626, %v626
      %v659 = vmul.f32 %v627, %v627
      %v660 = vmul.f32 %v628, %v628
      %v661 = vmul.f32 %v629, %v629
      %v662 = vmul.f32 %v630, %v630
      %v663 = vmul.f32 %v631, %v631
      %v664 = vmul.f32 %v632, %v632
      %v665 = vmul.f32 %v633, %v633
      %v666 = vmul.f32 %v634, %v634
      %v667 = vmul.f32 %v635, %v635
      %v668 = vmul.f32 %v636, %v636
      %v669 = vmul.f32 %v637, %v637
      %v670 = vmul.f32 %v638, %v638
      %v671 = vmul.f32 %v639, %v639
      %v672 = vmul.f32 %v640, %v640
      %v673 = vsel %vm538, %v641, 0.0
      %v674 = vsel %vm538, %v642, 0.0
      %v675 = vadd.f32 %v673, %v674
      %v676 = vsel %vm538, %v643, 0.0
      %v677 = vadd.f32 %v675, %v676
      %v678 = vsel %vm538, %v644, 0.0
      %v679 = vadd.f32 %v677, %v678
      %v680 = vsel %vm538, %v645, 0.0
      %v681 = vadd.f32 %v679, %v680
      %v682 = vsel %vm538, %v646, 0.0
      %v683 = vadd.f32 %v681, %v682
      %v684 = vsel %vm538, %v647, 0.0
      %v685 = vadd.f32 %v683, %v684
      %v686 = vsel %vm538, %v648, 0.0
      %v687 = vadd.f32 %v685, %v686
      %v688 = vsel %vm538, %v649, 0.0
      %v689 = vadd.f32 %v687, %v688
      %v690 = vsel %vm538, %v650, 0.0
      %v691 = vadd.f32 %v689, %v690
      %v692 = vsel %vm538, %v651, 0.0
      %v693 = vadd.f32 %v691, %v692
      %v694 = vsel %vm538, %v652, 0.0
      %v695 = vadd.f32 %v693, %v694
      %v696 = vsel %vm538, %v653, 0.0
      %v697 = vadd.f32 %v695, %v696
      %v698 = vsel %vm538, %v654, 0.0
      %v699 = vadd.f32 %v697, %v698
      %v700 = vsel %vm538, %v655, 0.0
      %v701 = vadd.f32 %v699, %v700
      %v702 = vsel %vm538, %v656, 0.0
      %v703 = vadd.f32 %v701, %v702
      %v704 = vsel %vm538, %v657, 0.0
      %v705 = vadd.f32 %v703, %v704
      %v706 = vsel %vm538, %v658, 0.0
      %v707 = vadd.f32 %v705, %v706
      %v708 = vsel %vm538, %v659, 0.0
      %v709 = vadd.f32 %v707, %v708
      %v710 = vsel %vm538, %v660, 0.0
      %v711 = vadd.f32 %v709, %v710
      %v712 = vsel %vm538, %v661, 0.0
      %v713 = vadd.f32 %v711, %v712
      %v714 = vsel %vm538, %v662, 0.0
      %v715 = vadd.f32 %v713, %v714
      %v716 = vsel %vm538, %v663, 0.0
      %v717 = vadd.f32 %v715, %v716
      %v718 = vsel %vm538, %v664, 0.0
      %v719 = vadd.f32 %v717, %v718
      %v720 = vsel %vm538, %v665, 0.0
      %v721 = vadd.f32 %v719, %v720
      %v722 = vsel %vm538, %v666, 0.0
      %v723 = vadd.f32 %v721, %v722
      %v724 = vsel %vm538, %v667, 0.0
      %v725 = vadd.f32 %v723, %v724
      %v726 = vsel %vm538, %v668, 0.0
      %v727 = vadd.f32 %v725, %v726
      %v728 = vsel %vm538, %v669, 0.0
      %v729 = vadd.f32 %v727, %v728
      %v730 = vsel %vm538, %v670, 0.0
      %v731 = vadd.f32 %v729, %v730
      %v732 = vsel %vm538, %v671, 0.0
      %v733 = vadd.f32 %v731, %v732
      %v734 = vsel %vm538, %v672, 0.0
      %v735 = vadd.f32 %v733, %v734
      %v736 = vrot.slane %v735, 4
      %v737 = vadd.f32 %v735, %v736
      %v738 = vrot.slane %v737, 2
      %v739 = vadd.f32 %v737, %v738
      %v740 = vrot.slane %v739, 1
      %v741 = vadd.f32 %v739, %v740
      %v742 = vmul.f32 %v741, 0.00390625
      %v743 = vadd.f32 %v742, 1e-05
      %v744 = vrsqrt.pop %v743
      %v745 = vmul.f32 %v609, %v744
      %v746 = vmul.f32 %v610, %v744
      %v747 = vmul.f32 %v611, %v744
      %v748 = vmul.f32 %v612, %v744
      %v749 = vmul.f32 %v613, %v744
      %v750 = vmul.f32 %v614, %v744
      %v751 = vmul.f32 %v615, %v744
      %v752 = vmul.f32 %v616, %v744
      %v753 = vmul.f32 %v617, %v744
      %v754 = vmul.f32 %v618, %v744
      %v755 = vmul.f32 %v619, %v744
      %v756 = vmul.f32 %v620, %v744
      %v757 = vmul.f32 %v621, %v744
      %v758 = vmul.f32 %v622, %v744
      %v759 = vmul.f32 %v623, %v744
      %v760 = vmul.f32 %v624, %v744
      %v761 = vmul.f32 %v625, %v744
      %v762 = vmul.f32 %v626, %v744
      %v763 = vmul.f32 %v627, %v744
      %v764 = vmul.f32 %v628, %v744
      %v765 = vmul.f32 %v629, %v744
      %v766 = vmul.f32 %v630, %v744
      %v767 = vmul.f32 %v631, %v744
      %v768 = vmul.f32 %v632, %v744
      %v769 = vmul.f32 %v633, %v744
      %v770 = vmul.f32 %v634, %v744
      %v771 = vmul.f32 %v635, %v744
      %v772 = vmul.f32 %v636, %v744
      %v773 = vmul.f32 %v637, %v744
      %v774 = vmul.f32 %v638, %v744
      %v775 = vmul.f32 %v639, %v744
      %v776 = vmul.f32 %v640, %v744
      %p777 = scmp.eq.s32.totalorder %s18, 0
      // Predicated region
      $region29: #{tpu_custom_call.1} parent=27 // pred_check
        %p778 = pneg %p777
      $region30: #{tpu_custom_call.1} parent=27 // pred_check_branch
        %780 = sbr.rel (%p778) target = $region32
      $region31: #{tpu_custom_call.1} parent=27 // pred_region
        %781 = vst.msk [vmem:[%s182] sm:$0xff] %vm538, %v745
        %782 = vst.msk [vmem:[%s182 + $0x8] sm:$0xff] %vm538, %v746
        %783 = vst.msk [vmem:[%s182 + $0x10] sm:$0xff] %vm538, %v747
        %784 = vst.msk [vmem:[%s182 + $0x18] sm:$0xff] %vm538, %v748
        %785 = vst.msk [vmem:[%s182 + $0x20] sm:$0xff] %vm538, %v749
        %786 = vst.msk [vmem:[%s182 + $0x28] sm:$0xff] %vm538, %v750
        %787 = vst.msk [vmem:[%s182 + $0x30] sm:$0xff] %vm538, %v751
        %788 = vst.msk [vmem:[%s182 + $0x38] sm:$0xff] %vm538, %v752
        %789 = vst.msk [vmem:[%s182 + $0x40] sm:$0xff] %vm538, %v753
        %790 = vst.msk [vmem:[%s182 + $0x48] sm:$0xff] %vm538, %v754
        %791 = vst.msk [vmem:[%s182 + $0x50] sm:$0xff] %vm538, %v755
        %792 = vst.msk [vmem:[%s182 + $0x58] sm:$0xff] %vm538, %v756
        %793 = vst.msk [vmem:[%s182 + $0x60] sm:$0xff] %vm538, %v757
        %794 = vst.msk [vmem:[%s182 + $0x68] sm:$0xff] %vm538, %v758
        %795 = vst.msk [vmem:[%s182 + $0x70] sm:$0xff] %vm538, %v759
        %796 = vst.msk [vmem:[%s182 + $0x78] sm:$0xff] %vm538, %v760
        %797 = vst.msk [vmem:[%s182 + $0x80] sm:$0xff] %vm538, %v761
        %798 = vst.msk [vmem:[%s182 + $0x88] sm:$0xff] %vm538, %v762
        %799 = vst.msk [vmem:[%s182 + $0x90] sm:$0xff] %vm538, %v763
        %800 = vst.msk [vmem:[%s182 + $0x98] sm:$0xff] %vm538, %v764
        %801 = vst.msk [vmem:[%s182 + $0xa0] sm:$0xff] %vm538, %v765
        %802 = vst.msk [vmem:[%s182 + $0xa8] sm:$0xff] %vm538, %v766
        %803 = vst.msk [vmem:[%s182 + $0xb0] sm:$0xff] %vm538, %v767
        %804 = vst.msk [vmem:[%s182 + $0xb8] sm:$0xff] %vm538, %v768
        %805 = vst.msk [vmem:[%s182 + $0xc0] sm:$0xff] %vm538, %v769
        %806 = vst.msk [vmem:[%s182 + $0xc8] sm:$0xff] %vm538, %v770
        %807 = vst.msk [vmem:[%s182 + $0xd0] sm:$0xff] %vm538, %v771
        %808 = vst.msk [vmem:[%s182 + $0xd8] sm:$0xff] %vm538, %v772
        %809 = vst.msk [vmem:[%s182 + $0xe0] sm:$0xff] %vm538, %v773
        %810 = vst.msk [vmem:[%s182 + $0xe8] sm:$0xff] %vm538, %v774
        %811 = vst.msk [vmem:[%s182 + $0xf0] sm:$0xff] %vm538, %v775
        %812 = vst.msk [vmem:[%s182 + $0xf8] sm:$0xff] %vm538, %v776
      $region32: #{tpu_custom_call.1} parent=27 // pred_fallthru
        _
      %p813 = scmp.gt.s32.totalorder %s18, 0
      // Predicated region
      $region33: #{tpu_custom_call.1} parent=27 // pred_check
        %p814 = pneg %p813
      $region34: #{tpu_custom_call.1} parent=27 // pred_check_branch
        %816 = sbr.rel (%p814) target = $region36
      $region35: #{tpu_custom_call.1} parent=27 // pred_region
        %v817 = vmax.f32 %v745, 0.0
        %v818 = vmax.f32 %v746, 0.0
        %v819 = vmax.f32 %v747, 0.0
        %v820 = vmax.f32 %v748, 0.0
        %v821 = vmax.f32 %v749, 0.0
        %v822 = vmax.f32 %v750, 0.0
        %v823 = vmax.f32 %v751, 0.0
        %v824 = vmax.f32 %v752, 0.0
        %v825 = vmax.f32 %v753, 0.0
        %v826 = vmax.f32 %v754, 0.0
        %v827 = vmax.f32 %v755, 0.0
        %v828 = vmax.f32 %v756, 0.0
        %v829 = vmax.f32 %v757, 0.0
        %v830 = vmax.f32 %v758, 0.0
        %v831 = vmax.f32 %v759, 0.0
        %v832 = vmax.f32 %v760, 0.0
        %v833 = vmax.f32 %v761, 0.0
        %v834 = vmax.f32 %v762, 0.0
        %v835 = vmax.f32 %v763, 0.0
        %v836 = vmax.f32 %v764, 0.0
        %v837 = vmax.f32 %v765, 0.0
        %v838 = vmax.f32 %v766, 0.0
        %v839 = vmax.f32 %v767, 0.0
        %v840 = vmax.f32 %v768, 0.0
        %v841 = vmax.f32 %v769, 0.0
        %v842 = vmax.f32 %v770, 0.0
        %v843 = vmax.f32 %v771, 0.0
        %v844 = vmax.f32 %v772, 0.0
        %v845 = vmax.f32 %v773, 0.0
        %v846 = vmax.f32 %v774, 0.0
        %v847 = vmax.f32 %v775, 0.0
        %v848 = vmax.f32 %v776, 0.0
        %849 = vst.msk [vmem:[%s182] sm:$0xff] %vm538, %v817
        %850 = vst.msk [vmem:[%s182 + $0x8] sm:$0xff] %vm538, %v818
        %851 = vst.msk [vmem:[%s182 + $0x10] sm:$0xff] %vm538, %v819
        %852 = vst.msk [vmem:[%s182 + $0x18] sm:$0xff] %vm538, %v820
        %853 = vst.msk [vmem:[%s182 + $0x20] sm:$0xff] %vm538, %v821
        %854 = vst.msk [vmem:[%s182 + $0x28] sm:$0xff] %vm538, %v822
        %855 = vst.msk [vmem:[%s182 + $0x30] sm:$0xff] %vm538, %v823
        %856 = vst.msk [vmem:[%s182 + $0x38] sm:$0xff] %vm538, %v824
        %857 = vst.msk [vmem:[%s182 + $0x40] sm:$0xff] %vm538, %v825
        %858 = vst.msk [vmem:[%s182 + $0x48] sm:$0xff] %vm538, %v826
        %859 = vst.msk [vmem:[%s182 + $0x50] sm:$0xff] %vm538, %v827
        %860 = vst.msk [vmem:[%s182 + $0x58] sm:$0xff] %vm538, %v828
        %861 = vst.msk [vmem:[%s182 + $0x60] sm:$0xff] %vm538, %v829
        %862 = vst.msk [vmem:[%s182 + $0x68] sm:$0xff] %vm538, %v830
        %863 = vst.msk [vmem:[%s182 + $0x70] sm:$0xff] %vm538, %v831
        %864 = vst.msk [vmem:[%s182 + $0x78] sm:$0xff] %vm538, %v832
        %865 = vst.msk [vmem:[%s182 + $0x80] sm:$0xff] %vm538, %v833
        %866 = vst.msk [vmem:[%s182 + $0x88] sm:$0xff] %vm538, %v834
        %867 = vst.msk [vmem:[%s182 + $0x90] sm:$0xff] %vm538, %v835
        %868 = vst.msk [vmem:[%s182 + $0x98] sm:$0xff] %vm538, %v836
        %869 = vst.msk [vmem:[%s182 + $0xa0] sm:$0xff] %vm538, %v837
        %870 = vst.msk [vmem:[%s182 + $0xa8] sm:$0xff] %vm538, %v838
        %871 = vst.msk [vmem:[%s182 + $0xb0] sm:$0xff] %vm538, %v839
        %872 = vst.msk [vmem:[%s182 + $0xb8] sm:$0xff] %vm538, %v840
        %873 = vst.msk [vmem:[%s182 + $0xc0] sm:$0xff] %vm538, %v841
        %874 = vst.msk [vmem:[%s182 + $0xc8] sm:$0xff] %vm538, %v842
        %875 = vst.msk [vmem:[%s182 + $0xd0] sm:$0xff] %vm538, %v843
        %876 = vst.msk [vmem:[%s182 + $0xd8] sm:$0xff] %vm538, %v844
        %877 = vst.msk [vmem:[%s182 + $0xe0] sm:$0xff] %vm538, %v845
        %878 = vst.msk [vmem:[%s182 + $0xe8] sm:$0xff] %vm538, %v846
        %879 = vst.msk [vmem:[%s182 + $0xf0] sm:$0xff] %vm538, %v847
        %880 = vst.msk [vmem:[%s182 + $0xf8] sm:$0xff] %vm538, %v848
      $region36: #{tpu_custom_call.1} parent=27 // pred_fallthru
        _
      %p881 = scmp.lt.s32.totalorder %s18, 3
      %s882 = scalar_select %p881, %s18, 3
      %p883 = scmp.lt.s32.totalorder %s17, 1
      %s884 = scalar_select %p883, %s17, 1
      %s885 = smul.addr %s884, 32
      %s886 = smul.addr %s882, 64
      %s887 = sadd.s32 %s885, %s886
      %s888 = smul.addr %s887, 8
      %s889 = scalar_lea.vmem %s2, %s888
      // Predicated region
      $region37: #{tpu_custom_call.1} parent=27 // pred_check
        %p890 = pneg %p97
      $region38: #{tpu_custom_call.1} parent=27 // pred_check_branch
        %892 = sbr.rel (%p890) target = $region40
      $region39: #{tpu_custom_call.1} parent=27 // pred_region
        _
      $region40: #{tpu_custom_call.1} parent=27 // pred_fallthru
        _
    $region28: #{tpu_custom_call.1} parent=5 // pred_fallthru
      _
    %p893 = scmp.le.s32.totalorder 2, %s8
    // Predicated region
    $region41: #{tpu_custom_call.1} parent=5 // pred_check
      %p894 = pneg %p893
    $region42: #{tpu_custom_call.1} parent=5 // pred_check_branch
      %896 = sbr.rel (%p894) target = $region44
    $region43: #{tpu_custom_call.1} parent=5 // pred_region
      %s897 = ssub.s32 %s8, 2
      // Predicated region
      $region45: #{tpu_custom_call.1} parent=43 // pred_check
        %p898 = pneg %p103
      $region46: #{tpu_custom_call.1} parent=43 // pred_check_branch
        %900 = sbr.rel (%p898) target = $region48
      $region47: #{tpu_custom_call.1} parent=43 // pred_region
        %p901 = scmp.lt.s32.totalorder %s20, 3
        %s902 = scalar_select %p901, %s20, 3
        %p903 = scmp.lt.s32.totalorder %s19, 1
        %s904 = scalar_select %p903, %s19, 1
        %s905 = smul.addr %s904, 32
        %s906 = smul.addr %s902, 64
        %s907 = sadd.s32 %s905, %s906
        %s908 = smul.addr %s907, 8
        %s909 = scalar_lea.vmem %s2, %s908
      $region48: #{tpu_custom_call.1} parent=43 // pred_fallthru
        _
    $region44: #{tpu_custom_call.1} parent=5 // pred_fallthru
      _
  $region6: #{tpu_custom_call.1} parent=0 // loop_footer
    %s12 = sadd.s32 1, %s8
  $region7: #{tpu_custom_call.1} parent=0 // loop_footer_branch
    %7 = sbr.rel target = $region3
  $region8: #{tpu_custom_call.1} parent=0 // loop_exit
    _

</llo_original>
